<compile_context>
chip_gen: v7x
topology: tpu7x:2x2x1
jax: 0.10.0
libtpu: 0.0.40
codegen_flags: <defaults>
</compile_context>

<pallas_src>
import functools

import jax
import jax.numpy as jnp
from jax import lax
from jax.experimental import pallas as pl
from jax.experimental.pallas import tpu as pltpu


def _node_feat_kernel(ux_ref, vx_ref, eg_ref, out_ref, num_acc, den_acc, *,
                      fold, h, tile_m, row_chunk):
    # ux_ref  : (TM, H)             precomputed U(x) rows for this dst tile
    # vx_ref  : (TKp, fold*H)       lane-packed V(x) rows for this src tile
    # eg_ref  : (TM, TKp, fold*H)   lane-packed e_gate tile (f32 or bf16)
    # out_ref : (TM, H)
    # num_acc / den_acc : (TM, fold*H) f32 VMEM accumulators (persist over k)
    k = pl.program_id(1)

    @pl.when(k == 0)
    def _init():
        num_acc[...] = jnp.zeros_like(num_acc)
        den_acc[...] = jnp.zeros_like(den_acc)

    tkp, lane_w = vx_ref.shape
    # Hoisted once per grid step: chunk-sized broadcast of Vx.  Do NOT move
    # this into the loop body (JAX does not CSE broadcast_in_dim).
    vx_b = jnp.broadcast_to(vx_ref[...].astype(jnp.float32)[None, :, :],
                            (row_chunk, tkp, lane_w))

    def _chunk(c, carry):
        r = pl.multiple_of(c * row_chunk, row_chunk)
        # Single pass per chunk: load/upcast once, update both accumulators
        # while the chunk is live (no tile-sized f32 temporary, reduce result
        # for each 8-row chunk lands in a single accumulator vreg).
        chunk = eg_ref[pl.ds(r, row_chunk), :, :].astype(jnp.float32)
        num_acc[pl.ds(r, row_chunk), :] += jnp.sum(chunk * vx_b, axis=1)
        den_acc[pl.ds(r, row_chunk), :] += jnp.sum(chunk, axis=1)
        return carry

    lax.fori_loop(0, tile_m // row_chunk, _chunk, 0, unroll=True)

    @pl.when(k == pl.num_programs(1) - 1)
    def _finalize():
        num_p = num_acc[...]                 # (TM, fold*H)
        den_p = den_acc[...]
        # Undo lane packing: lane group g holds source nodes j == g (mod fold).
        num = num_p[:, :h]
        den = den_p[:, :h]
        for g in range(1, fold):
            shift = (fold - g) * h           # rotate group g down to lanes [0,H)
            num = num + pltpu.roll(num_p, shift=shift, axis=1)[:, :h]
            den = den + pltpu.roll(den_p, shift=shift, axis=1)[:, :h]
        inv = pl.reciprocal(den + 1e-20, approx=False)   # exact: keeps 1e-4 tol
        out_ref[...] = (ux_ref[...].astype(jnp.float32) + num * inv
                        ).astype(out_ref.dtype)


def _pick_tile(dim, cap, mult):
    """Largest divisor of `dim` that is <= cap and a multiple of `mult`;
    falls back to the full dim (a full-extent block is always legal)."""
    for d in range(min(cap, dim), 0, -1):
        if dim % d == 0 and d % mult == 0:
            return d
    return dim


def _vmem_capacity_bytes():
    """Physical VMEM per core; conservative (v7x-sized) fallback if unknown."""
    try:
        cap = int(getattr(pltpu.get_tpu_info(), "vmem_capacity_bytes", 0))
        if cap > 0:
            return cap
    except Exception:
        pass
    return 64 * 1024 * 1024


def node_feat(x, e_gate, wu, bu, wv, bv, *, tile_m=None, tile_k=None):
    """x: (N, H) f32; e_gate: (N, N, H), f32 or bf16 — the bf16 stream is
    recommended on all TPU generations (v5e included): the kernel is HBM-bound
    and accumulation stays in f32 scratch.  wu/wv: (H, H) already in x @ W
    form; bu/bv: (H,).  Returns (N, H) f32."""
    n, h = x.shape
    assert e_gate.shape == (n, n, h)

    # ---- hoisted tiny matmuls (plain XLA, not worth MXU time in-kernel) ----
    ux = (jnp.dot(x, wu, preferred_element_type=jnp.float32) + bu).astype(jnp.float32)
    vx = (jnp.dot(x, wv, preferred_element_type=jnp.float32) + bv).astype(jnp.float32)

    # ---- lane packing: fold source nodes into the 128-lane axis ----
    fold = 1
    if h < 128 and 128 % h == 0 and n % (128 // h) == 0:
        fold = 128 // h
    n_pk = n // fold
    lane_w = fold * h
    eg_p = e_gate.reshape(n, n_pk, lane_w)     # contiguous reshape: free
    vx_p = vx.reshape(n_pk, lane_w)

    eg_item = jnp.dtype(e_gate.dtype).itemsize
    sub = {4: 8, 2: 16, 1: 32}.get(eg_item, 8)   # min sublane multiple per dtype

    # ---- generation-aware budgets (v5e/v6e: 128 MiB VMEM; v7x: 64 MiB) -----
    vmem_cap = _vmem_capacity_bytes()
    eg_budget = (10 << 20) if vmem_cap >= (96 << 20) else (8 << 20)

    # ---- tile selection: small-ish dst tile, give the byte budget to tkp ---
    # tile_m capped at min(128, N//2): keeps grid[0] >= 2 so both v7x TCs get
    # work; larger tkp means longer contiguous DMA runs per dst row.
    if tile_m is None:
        cap_m = max(8, min(128, n // 2 if n >= 16 else n))
        tile_m = _pick_tile(n, cap_m, 8)
    if tile_k is None:
        cap_rows = max(sub, eg_budget // (tile_m * lane_w * eg_item))
        tkp = _pick_tile(n_pk, cap_rows, sub)
        tile_k = tkp * fold
    else:
        assert tile_k % fold == 0, "tile_k must be a multiple of the lane fold"
        tkp = tile_k // fold
    assert n % tile_m == 0 and (tile_m % 8 == 0 or tile_m == n)
    assert n_pk % tkp == 0 and (tkp % sub == 0 or tkp == n_pk)

    row_chunk = 8 if tile_m % 8 == 0 else tile_m
    grid = (n // tile_m, n_pk // tkp)

    # ---- VMEM accounting: double-buffered tiles + chunk temps + accumulators
    eg_tile_bytes = tile_m * tkp * lane_w * eg_item
    chunk_f32 = row_chunk * tkp * lane_w * 4            # upcast / product / vx_b
    acc_bytes = 2 * tile_m * lane_w * 4
    io_bytes = 2 * 2 * tile_m * h * 4 + 2 * tkp * lane_w * 4   # ux+out, vx (2 bufs)
    vmem_need = 2 * eg_tile_bytes + 3 * chunk_f32 + acc_bytes + io_bytes + (4 << 20)
    # Clamp below physical VMEM (v7x: 64 MiB) with headroom.
    vmem_limit = int(min(vmem_cap - (8 << 20), max(32 << 20, vmem_need)))

    kernel = functools.partial(_node_feat_kernel, fold=fold, h=h,
                               tile_m=tile_m, row_chunk=row_chunk)

    return pl.pallas_call(
        kernel,
        out_shape=jax.ShapeDtypeStruct((n, h), jnp.float32),
        grid_spec=pltpu.PrefetchScalarGridSpec(
            num_scalar_prefetch=0,
            grid=grid,
            in_specs=[
                pl.BlockSpec((tile_m, h), lambda i, k: (i, 0)),               # Ux tile
                pl.BlockSpec((tkp, lane_w), lambda i, k: (k, 0)),             # Vx (packed)
                # If profiling still shows exposed DMA, add
                # pipeline_mode=pl.Buffered(3) here (re-check v7x VMEM first).
                pl.BlockSpec((tile_m, tkp, lane_w), lambda i, k: (i, k, 0)),  # e_gate tile
            ],
            out_specs=pl.BlockSpec((tile_m, h), lambda i, k: (i, 0)),
            scratch_shapes=[pltpu.VMEM((tile_m, lane_w), jnp.float32),
                            pltpu.VMEM((tile_m, lane_w), jnp.float32)],
        ),
        compiler_params=pltpu.CompilerParams(
            dimension_semantics=("parallel", "arbitrary"),
            vmem_limit_bytes=vmem_limit),
    )(ux, vx_p, eg_p)


def node_feat_ref(x, e_gate, wu, bu, wv, bv):
    ux = x @ wu + bu
    vx = x @ wv + bv
    eg = e_gate.astype(jnp.float32)
    num = jnp.sum(eg * vx[None, :, :], axis=1)
    den = jnp.sum(eg, axis=1)
    return ux + num / (1e-20 + den)


if __name__ == "__main__":
    key = jax.random.PRNGKey(0)
    n, hidden = 64, 32  # N nodes, hidden_dim

    k_x, k_e, k_wu, k_bu, k_wv, k_bv = jax.random.split(key, 6)
    x = jax.random.normal(k_x, (n, hidden), dtype=jnp.float32)
    e_gate = jax.nn.sigmoid(jax.random.normal(k_e, (n, n, hidden), dtype=jnp.float32))

    # nn.Linear(hidden, hidden): PyTorch stores (out, in); we pass W^T so the
    # wrapper computes x @ W^T directly. Deterministic synthetic init.
    bound = 1.0 / (hidden ** 0.5)
    wu_t = jax.random.uniform(k_wu, (hidden, hidden), jnp.float32, -bound, bound)
    bu = jax.random.uniform(k_bu, (hidden,), jnp.float32, -bound, bound)
    wv_t = jax.random.uniform(k_wv, (hidden, hidden), jnp.float32, -bound, bound)
    bv = jax.random.uniform(k_bv, (hidden,), jnp.float32, -bound, bound)

    ref = node_feat_ref(x, e_gate, wu_t, bu, wv_t, bv)

    # 1) f32 stream, manual tiles: grid = (4 dst tiles, 2 reduction steps) with
    #    two 8-row chunks per step -> exercises init/finalize gating, the
    #    chunked hot loop, and the fold=4 lane-unfold epilogue.
    out = node_feat(x, e_gate, wu_t, bu, wv_t, bv, tile_m=16, tile_k=32)
    out = jax.block_until_ready(out)
    assert out.shape == (n, hidden)
    assert jnp.allclose(out, ref, atol=1e-4, rtol=1e-4), "f32 mismatch vs reference"

    # 2) f32 stream, auto-picked tiles (the production path).
    out_auto = jax.block_until_ready(node_feat(x, e_gate, wu_t, bu, wv_t, bv))
    assert jnp.allclose(out_auto, ref, atol=1e-4, rtol=1e-4), "auto-tile mismatch"

    # 3) bf16 e_gate stream (recommended on v5e/v6e/v7x: halves the dominant
    #    HBM traffic); accumulation stays in f32 VMEM scratch.
    out_bf16 = node_feat(x, e_gate.astype(jnp.bfloat16), wu_t, bu, wv_t, bv,
                         tile_m=16, tile_k=64)
    out_bf16 = jax.block_until_ready(out_bf16)
    assert jnp.allclose(out_bf16, ref, atol=5e-2, rtol=5e-2), "bf16 mismatch vs reference"

    # 4) fold == 1 path (H >= 128): no lane packing, degenerate unfold.
    n2, h2 = 32, 128
    k2 = jax.random.split(key, 7)
    x2 = jax.random.normal(k2[0], (n2, h2), dtype=jnp.float32)
    eg2 = jax.nn.sigmoid(jax.random.normal(k2[1], (n2, n2, h2), dtype=jnp.float32))
    b2 = 1.0 / (h2 ** 0.5)
    wu2 = jax.random.uniform(k2[2], (h2, h2), jnp.float32, -b2, b2)
    bu2 = jax.random.uniform(k2[3], (h2,), jnp.float32, -b2, b2)
    wv2 = jax.random.uniform(k2[4], (h2, h2), jnp.float32, -b2, b2)
    bv2 = jax.random.uniform(k2[5], (h2,), jnp.float32, -b2, b2)
    ref2 = node_feat_ref(x2, eg2, wu2, bu2, wv2, bv2)
    out2 = jax.block_until_ready(node_feat(x2, eg2, wu2, bu2, wv2, bv2))
    assert jnp.allclose(out2, ref2, atol=1e-4, rtol=1e-4), "fold=1 mismatch"

    print("KERNEL_OK")
</pallas_src>

<mosaic_0001>
module attributes {stable_mosaic.version = 11 : i64} {
  func.func @_node_feat_kernel(%arg0: i32, %arg1: i32, %arg2: memref<16x32xf32, #tpu.memory_space<vmem>>, %arg3: memref<8x128xf32, #tpu.memory_space<vmem>>, %arg4: memref<16x8x128xf32, #tpu.memory_space<vmem>>, %arg5: memref<16x32xf32, #tpu.memory_space<vmem>>, %arg6: memref<16x128xf32, #tpu.memory_space<vmem>>, %arg7: memref<16x128xf32, #tpu.memory_space<vmem>>) attributes {dimension_semantics = [#tpu.dimension_semantics<parallel>, #tpu.dimension_semantics<arbitrary>], iteration_bounds = array<i64: 4, 2>, scalar_prefetch = 0 : i64, scratch_operands = 2 : i64, tpu.core_type = #tpu.core_type<tc>, window_params = [{transform_indices = @transform_0, window_bounds = array<i64: 16, 32>}, {transform_indices = @transform_1, window_bounds = array<i64: 8, 128>}, {transform_indices = @transform_2, window_bounds = array<i64: 16, 8, 128>}, {transform_indices = @transform_3, window_bounds = array<i64: 16, 32>}]} {
    %c0_i32 = arith.constant 0 : i32
    %0 = arith.cmpi eq, %arg1, %c0_i32 : i32
    %1 = arith.extui %0 : i1 to i32
    %c0_i32_0 = arith.constant 0 : i32
    %2 = arith.cmpi ne, %1, %c0_i32_0 : i32
    scf.if %2 {
      %cst_21 = arith.constant 0.000000e+00 : f32
      %44 = vector.broadcast %cst_21 : f32 to vector<16x128xf32>
      %c0_22 = arith.constant 0 : index
      %c0_23 = arith.constant 0 : index
      %45 = vector.load %arg6[%c0_22, %c0_23] : memref<16x128xf32, #tpu.memory_space<vmem>>, vector<16x128xf32>
      tpu.vector_store %arg6[%c0_22, %c0_23], %44 {strides = array<i32>} : memref<16x128xf32, #tpu.memory_space<vmem>>, vector<16x128xf32>,
      %cst_24 = arith.constant 0.000000e+00 : f32
      %46 = vector.broadcast %cst_24 : f32 to vector<16x128xf32>
      %c0_25 = arith.constant 0 : index
      %c0_26 = arith.constant 0 : index
      %47 = vector.load %arg7[%c0_25, %c0_26] : memref<16x128xf32, #tpu.memory_space<vmem>>, vector<16x128xf32>
      tpu.vector_store %arg7[%c0_25, %c0_26], %46 {strides = array<i32>} : memref<16x128xf32, #tpu.memory_space<vmem>>, vector<16x128xf32>,
    } else {
    }
    %c0 = arith.constant 0 : index
    %c0_1 = arith.constant 0 : index
    %3 = vector.load %arg3[%c0, %c0_1] : memref<8x128xf32, #tpu.memory_space<vmem>>, vector<8x128xf32>
    %4 = vector.shape_cast %3 : vector<8x128xf32> to vector<1x8x128xf32>
    %5 = vector.shape_cast %4 : vector<1x8x128xf32> to vector<1x8x128xf32>
    %6 = vector.broadcast %5 : vector<1x8x128xf32> to vector<8x8x128xf32>
    %c0_i32_2 = arith.constant 0 : i32
    %c8_i32 = arith.constant 8 : i32
    %7 = arith.muli %c0_i32_2, %c8_i32 : i32
    %8 = tpu.assume_multiple %7, 8 : i32
    %9 = arith.index_cast %8 : i32 to index
    %c0_3 = arith.constant 0 : index
    %c0_4 = arith.constant 0 : index
    %10 = vector.load %arg4[%9, %c0_3, %c0_4] : memref<16x8x128xf32, #tpu.memory_space<vmem>>, vector<8x8x128xf32>
    %11 = arith.index_cast %8 : i32 to index
    %c0_5 = arith.constant 0 : index
    %12 = vector.load %arg6[%11, %c0_5] : memref<16x128xf32, #tpu.memory_space<vmem>>, vector<8x128xf32>
    %13 = arith.mulf %10, %6 : vector<8x8x128xf32>
    %cst = arith.constant dense<0.000000e+00> : vector<8x128xf32>
    %14 = vector.multi_reduction <add>, %13, %cst [1] : vector<8x8x128xf32> to vector<8x128xf32>
    %15 = arith.addf %12, %14 : vector<8x128xf32>
    %16 = arith.index_cast %8 : i32 to index
    %c0_6 = arith.constant 0 : index
    %17 = vector.load %arg6[%16, %c0_6] : memref<16x128xf32, #tpu.memory_space<vmem>>, vector<8x128xf32>
    tpu.vector_store %arg6[%16, %c0_6], %15 {strides = array<i32>} : memref<16x128xf32, #tpu.memory_space<vmem>>, vector<8x128xf32>,
    %18 = arith.index_cast %8 : i32 to index
    %c0_7 = arith.constant 0 : index
    %19 = vector.load %arg7[%18, %c0_7] : memref<16x128xf32, #tpu.memory_space<vmem>>, vector<8x128xf32>
    %cst_8 = arith.constant dense<0.000000e+00> : vector<8x128xf32>
    %20 = vector.multi_reduction <add>, %10, %cst_8 [1] : vector<8x8x128xf32> to vector<8x128xf32>
    %21 = arith.addf %19, %20 : vector<8x128xf32>
    %22 = arith.index_cast %8 : i32 to index
    %c0_9 = arith.constant 0 : index
    %23 = vector.load %arg7[%22, %c0_9] : memref<16x128xf32, #tpu.memory_space<vmem>>, vector<8x128xf32>
    tpu.vector_store %arg7[%22, %c0_9], %21 {strides = array<i32>} : memref<16x128xf32, #tpu.memory_space<vmem>>, vector<8x128xf32>,
    %c1_i32 = arith.constant 1 : i32
    %c8_i32_10 = arith.constant 8 : i32
    %24 = arith.muli %c1_i32, %c8_i32_10 : i32
    %25 = tpu.assume_multiple %24, 8 : i32
    %26 = arith.index_cast %25 : i32 to index
    %c0_11 = arith.constant 0 : index
    %c0_12 = arith.constant 0 : index
    %27 = vector.load %arg4[%26, %c0_11, %c0_12] : memref<16x8x128xf32, #tpu.memory_space<vmem>>, vector<8x8x128xf32>
    %28 = arith.index_cast %25 : i32 to index
    %c0_13 = arith.constant 0 : index
    %29 = vector.load %arg6[%28, %c0_13] : memref<16x128xf32, #tpu.memory_space<vmem>>, vector<8x128xf32>
    %30 = arith.mulf %27, %6 : vector<8x8x128xf32>
    %cst_14 = arith.constant dense<0.000000e+00> : vector<8x128xf32>
    %31 = vector.multi_reduction <add>, %30, %cst_14 [1] : vector<8x8x128xf32> to vector<8x128xf32>
    %32 = arith.addf %29, %31 : vector<8x128xf32>
    %33 = arith.index_cast %25 : i32 to index
    %c0_15 = arith.constant 0 : index
    %34 = vector.load %arg6[%33, %c0_15] : memref<16x128xf32, #tpu.memory_space<vmem>>, vector<8x128xf32>
    tpu.vector_store %arg6[%33, %c0_15], %32 {strides = array<i32>} : memref<16x128xf32, #tpu.memory_space<vmem>>, vector<8x128xf32>,
    %35 = arith.index_cast %25 : i32 to index
    %c0_16 = arith.constant 0 : index
    %36 = vector.load %arg7[%35, %c0_16] : memref<16x128xf32, #tpu.memory_space<vmem>>, vector<8x128xf32>
    %cst_17 = arith.constant dense<0.000000e+00> : vector<8x128xf32>
    %37 = vector.multi_reduction <add>, %27, %cst_17 [1] : vector<8x8x128xf32> to vector<8x128xf32>
    %38 = arith.addf %36, %37 : vector<8x128xf32>
    %39 = arith.index_cast %25 : i32 to index
    %c0_18 = arith.constant 0 : index
    %40 = vector.load %arg7[%39, %c0_18] : memref<16x128xf32, #tpu.memory_space<vmem>>, vector<8x128xf32>
    tpu.vector_store %arg7[%39, %c0_18], %38 {strides = array<i32>} : memref<16x128xf32, #tpu.memory_space<vmem>>, vector<8x128xf32>,
    %c2_i32 = arith.constant 2 : i32
    %c1_i32_19 = arith.constant 1 : i32
    %41 = arith.cmpi eq, %arg1, %c1_i32_19 : i32
    %42 = arith.extui %41 : i1 to i32
    %c0_i32_20 = arith.constant 0 : i32
    %43 = arith.cmpi ne, %42, %c0_i32_20 : i32
    scf.if %43 {
      %c0_21 = arith.constant 0 : index
      %c0_22 = arith.constant 0 : index
      %44 = vector.load %arg6[%c0_21, %c0_22] : memref<16x128xf32, #tpu.memory_space<vmem>>, vector<16x128xf32>
      %c0_23 = arith.constant 0 : index
      %c0_24 = arith.constant 0 : index
      %45 = vector.load %arg7[%c0_23, %c0_24] : memref<16x128xf32, #tpu.memory_space<vmem>>, vector<16x128xf32>
      %46 = vector.extract_strided_slice %44 {offsets = [0, 0], sizes = [16, 32], strides = [1, 1]} : vector<16x128xf32> to vector<16x32xf32>
      %47 = vector.extract_strided_slice %45 {offsets = [0, 0], sizes = [16, 32], strides = [1, 1]} : vector<16x128xf32> to vector<16x32xf32>
      %c96_i32 = arith.constant 96 : i32
      %48 = tpu.dynamic_rotate %44 by %c96_i32 dim 1 : vector<16x128xf32>, i32 -> vector<16x128xf32>
      %49 = vector.extract_strided_slice %48 {offsets = [0, 0], sizes = [16, 32], strides = [1, 1]} : vector<16x128xf32> to vector<16x32xf32>
      %50 = arith.addf %46, %49 : vector<16x32xf32>
      %c96_i32_25 = arith.constant 96 : i32
      %51 = tpu.dynamic_rotate %45 by %c96_i32_25 dim 1 : vector<16x128xf32>, i32 -> vector<16x128xf32>
      %52 = vector.extract_strided_slice %51 {offsets = [0, 0], sizes = [16, 32], strides = [1, 1]} : vector<16x128xf32> to vector<16x32xf32>
      %53 = arith.addf %47, %52 : vector<16x32xf32>
      %c64_i32 = arith.constant 64 : i32
      %54 = tpu.dynamic_rotate %44 by %c64_i32 dim 1 : vector<16x128xf32>, i32 -> vector<16x128xf32>
      %55 = vector.extract_strided_slice %54 {offsets = [0, 0], sizes = [16, 32], strides = [1, 1]} : vector<16x128xf32> to vector<16x32xf32>
      %56 = arith.addf %50, %55 : vector<16x32xf32>
      %c64_i32_26 = arith.constant 64 : i32
      %57 = tpu.dynamic_rotate %45 by %c64_i32_26 dim 1 : vector<16x128xf32>, i32 -> vector<16x128xf32>
      %58 = vector.extract_strided_slice %57 {offsets = [0, 0], sizes = [16, 32], strides = [1, 1]} : vector<16x128xf32> to vector<16x32xf32>
      %59 = arith.addf %53, %58 : vector<16x32xf32>
      %c32_i32 = arith.constant 32 : i32
      %60 = tpu.dynamic_rotate %44 by %c32_i32 dim 1 : vector<16x128xf32>, i32 -> vector<16x128xf32>
      %61 = vector.extract_strided_slice %60 {offsets = [0, 0], sizes = [16, 32], strides = [1, 1]} : vector<16x128xf32> to vector<16x32xf32>
      %62 = arith.addf %56, %61 : vector<16x32xf32>
      %c32_i32_27 = arith.constant 32 : i32
      %63 = tpu.dynamic_rotate %45 by %c32_i32_27 dim 1 : vector<16x128xf32>, i32 -> vector<16x128xf32>
      %64 = vector.extract_strided_slice %63 {offsets = [0, 0], sizes = [16, 32], strides = [1, 1]} : vector<16x128xf32> to vector<16x32xf32>
      %65 = arith.addf %59, %64 : vector<16x32xf32>
      %cst_28 = arith.constant 9.99999968E-21 : f32
      %66 = vector.broadcast %cst_28 : f32 to vector<16x32xf32>
      %67 = arith.addf %65, %66 : vector<16x32xf32>
      %68 = tpu.reciprocal %67 : vector<16x32xf32> -> vector<16x32xf32>
      %c0_29 = arith.constant 0 : index
      %c0_30 = arith.constant 0 : index
      %69 = vector.load %arg2[%c0_29, %c0_30] : memref<16x32xf32, #tpu.memory_space<vmem>>, vector<16x32xf32>
      %70 = arith.mulf %62, %68 : vector<16x32xf32>
      %71 = arith.addf %69, %70 : vector<16x32xf32>
      %c0_31 = arith.constant 0 : index
      %c0_32 = arith.constant 0 : index
      %72 = vector.load %arg5[%c0_31, %c0_32] : memref<16x32xf32, #tpu.memory_space<vmem>>, vector<16x32xf32>
      tpu.vector_store %arg5[%c0_31, %c0_32], %71 {strides = array<i32>} : memref<16x32xf32, #tpu.memory_space<vmem>>, vector<16x32xf32>,
    } else {
    }
    return
  }
  func.func @transform_0(%arg0: i32, %arg1: i32) -> (i32, i32) {
    %c0_i32 = arith.constant 0 : i32
    %c0_i32_0 = arith.constant 0 : i32
    return %arg0, %c0_i32 : i32, i32
  }
  func.func @transform_1(%arg0: i32, %arg1: i32) -> (i32, i32) {
    %c0_i32 = arith.constant 0 : i32
    %c0_i32_0 = arith.constant 0 : i32
    return %arg1, %c0_i32 : i32, i32
  }
  func.func @transform_2(%arg0: i32, %arg1: i32) -> (i32, i32, i32) {
    %c0_i32 = arith.constant 0 : i32
    %c0_i32_0 = arith.constant 0 : i32
    return %arg0, %arg1, %c0_i32 : i32, i32, i32
  }
  func.func @transform_3(%arg0: i32, %arg1: i32) -> (i32, i32) {
    %c0_i32 = arith.constant 0 : i32
    %c0_i32_0 = arith.constant 0 : i32
    return %arg0, %c0_i32 : i32, i32
  }
}

</mosaic_0001>

<llo_original>
// kernel: tpu_custom_call.1
$region0: #{tpu_custom_call.1}
  #allocation0 [shape = 'u32[]', space=smem, size = 0x4, offset = 0x4, fixed_abs, tag = 'smem constant byte address 0x4 - core index']
  #allocation1 [shape = 'u32[144,128]{1,0:T(1,128)}', space=vmem, size = 0x12000, scoped, tag = 'internal scratch']
  #allocation2 [shape = 'f32[16,128]{1,0:T(8,128)}', space=vmem, size = 0x2000, scoped, tag = 'scratch operand']
  #allocation3 [shape = 'f32[16,128]{1,0:T(8,128)}', space=vmem, size = 0x2000, scoped, tag = 'scratch operand']
  %s0 = inlined_call_operand.vmem [shape: f32[64,32], index: 0, kind: input, shape index: {}]
  %s1 = inlined_call_operand.vmem [shape: f32[16,128], index: 1, kind: input, shape index: {}]
  %s2 = inlined_call_operand.hbm [shape: f32[64,16,128], index: 2, kind: input, shape index: {}]
  %s3 = inlined_call_operand.vmem [shape: f32[64,32], index: 3, kind: output, shape index: {}]
  %s4 = sld [smem:[#allocation0]]
  $region57: #{tpu_custom_call.1} parent=0
    _
  %s6 = ssub.s32 1, %s4
  %s7 = scalar_select 0, %s6, %s4
  $region1: #{tpu_custom_call.1} parent=0
    #allocation4 [shape = 'u8[131072]{0}', space=vmem, size = 0x20000, scoped, tag = 'input window, operand 2']
    #allocation5 [shape = 's32[2]{0}', space=sflag, size = 0x8, scoped, tag = 'scoped memory for tpu_custom_call.1']
    %8 = vsyncpa [#allocation5], 0
    %s9 = scalar_lea.sflag [#allocation5], 1
    %10 = vsyncpa %s9, 0
    loop: start=0, step=1, limit=10
    $region2: #{tpu_custom_call.1} parent=1 // loop_pre_header
      _
    $region3: #{tpu_custom_call.1} parent=1 // loop_header
      %s12 = sphi 0, %s16
      %p13 = scmp.ge.s32.totalorder %s12, 10
      %s19 = sphi 0, %s31
      %s20 = sphi 0, %s27
      %s21 = sphi 0, %s19
      %s22 = sphi 0, %s20
      %s23 = sphi 0, %s21
      %s24 = sphi 0, %s22
      %s34 = sphi 0, %s36
      %s37 = sphi 0, %s34
      %s38 = sphi 0, %s37
      %s54 = sphi 0, %s38
      %s60 = sphi 0, %s62
      %s63 = sphi 0, %s60
      %s64 = sphi 0, %s63
      %s80 = sphi 0, %s64
      %s88 = sphi 0, %s90
      %s91 = sphi 0, %s88
      %s92 = sphi 0, %s91
      %s108 = sphi 0, %s92
      %s114 = sphi 0, %s116
      %s117 = sphi 0, %s114
      %s118 = sphi 0, %s117
      %s134 = sphi 0, %s118
    $region4: #{tpu_custom_call.1} parent=1 // loop_header_branch
      %15 = sbr.rel (%p13) target = $region8
    $region5: #{tpu_custom_call.1} parent=1 // loop_body
      %s17 = ssub.s32 %s12, 1
      %s18 = ssub.s32 %s12, 2
      %s25 = sadd.s32 1, %s20
      %p26 = scmp.ge.s32.totalorder %s25, 2
      %s27 = scalar_select %p26, 0, %s25
      %s28 = sadd.s32 1, %s19
      %s29 = scalar_select %p26, %s28, %s19
      %p30 = scmp.ge.s32.totalorder %s29, 4
      %s31 = scalar_select %p30, 0, %s29
      %s32 = ssub.s32 %s19, %s31
      %p33 = scmp.eq.s32.totalorder %s32, 0
      %s35 = sadd.s32 %s34, 1
      %s36 = scalar_select %p33, %s34, %s35
      %p39 = pneg %p33
      %p40 = scmp.eq.s32.totalorder %s12, 7
      %p41 = por %p39, %p40
      %p42 = scmp.ne.s32.totalorder %s34, %s37
      %p43 = scmp.eq.s32.totalorder %s12, 0
      %p44 = por %p42, %p43
      %p45 = scmp.ne.s32.totalorder %s34, %s37
      %p46 = scmp.eq.s32.totalorder %s17, 7
      %p47 = por %p45, %p46
      %p48 = scmp.ne.s32.totalorder %s37, %s38
      %p49 = scmp.eq.s32.totalorder %s17, 0
      %p50 = por %p48, %p49
      %p51 = scmp.ne.s32.totalorder %s37, %s38
      %p52 = scmp.eq.s32.totalorder %s18, 7
      %p53 = por %p51, %p52
      %p55 = scmp.ne.s32.totalorder %s38, %s54
      %p56 = scmp.eq.s32.totalorder %s18, 0
      %p57 = por %p55, %p56
      %s58 = ssub.s32 %s20, %s27
      %p59 = scmp.eq.s32.totalorder %s58, 0
      %s61 = sadd.s32 %s60, 1
      %s62 = scalar_select %p59, %s60, %s61
      %p65 = pneg %p59
      %p66 = scmp.eq.s32.totalorder %s12, 7
      %p67 = por %p65, %p66
      %p68 = scmp.ne.s32.totalorder %s60, %s63
      %p69 = scmp.eq.s32.totalorder %s12, 0
      %p70 = por %p68, %p69
      %p71 = scmp.ne.s32.totalorder %s60, %s63
      %p72 = scmp.eq.s32.totalorder %s17, 7
      %p73 = por %p71, %p72
      %p74 = scmp.ne.s32.totalorder %s63, %s64
      %p75 = scmp.eq.s32.totalorder %s17, 0
      %p76 = por %p74, %p75
      %p77 = scmp.ne.s32.totalorder %s63, %s64
      %p78 = scmp.eq.s32.totalorder %s18, 7
      %p79 = por %p77, %p78
      %p81 = scmp.ne.s32.totalorder %s64, %s80
      %p82 = scmp.eq.s32.totalorder %s18, 0
      %p83 = por %p81, %p82
      %s84 = ssub.s32 %s19, %s31
      %s85 = ssub.s32 %s20, %s27
      %s86 = sor.u32 %s84, %s85
      %p87 = scmp.eq.s32.totalorder %s86, 0
      %s89 = sadd.s32 %s88, 1
      %s90 = scalar_select %p87, %s88, %s89
      %p93 = pneg %p87
      %p94 = scmp.eq.s32.totalorder %s12, 7
      %p95 = por %p93, %p94
      %p96 = scmp.ne.s32.totalorder %s88, %s91
      %p97 = scmp.eq.s32.totalorder %s12, 0
      %p98 = por %p96, %p97
      %p99 = scmp.ne.s32.totalorder %s88, %s91
      %p100 = scmp.eq.s32.totalorder %s17, 7
      %p101 = por %p99, %p100
      %p102 = scmp.ne.s32.totalorder %s91, %s92
      %p103 = scmp.eq.s32.totalorder %s17, 0
      %p104 = por %p102, %p103
      %p105 = scmp.ne.s32.totalorder %s91, %s92
      %p106 = scmp.eq.s32.totalorder %s18, 7
      %p107 = por %p105, %p106
      %p109 = scmp.ne.s32.totalorder %s92, %s108
      %p110 = scmp.eq.s32.totalorder %s18, 0
      %p111 = por %p109, %p110
      %s112 = ssub.s32 %s19, %s31
      %p113 = scmp.eq.s32.totalorder %s112, 0
      %s115 = sadd.s32 %s114, 1
      %s116 = scalar_select %p113, %s114, %s115
      %p119 = pneg %p113
      %p120 = scmp.eq.s32.totalorder %s12, 7
      %p121 = por %p119, %p120
      %p122 = scmp.ne.s32.totalorder %s114, %s117
      %p123 = scmp.eq.s32.totalorder %s12, 0
      %p124 = por %p122, %p123
      %p125 = scmp.ne.s32.totalorder %s114, %s117
      %p126 = scmp.eq.s32.totalorder %s17, 7
      %p127 = por %p125, %p126
      %p128 = scmp.ne.s32.totalorder %s117, %s118
      %p129 = scmp.eq.s32.totalorder %s17, 0
      %p130 = por %p128, %p129
      %p131 = scmp.ne.s32.totalorder %s117, %s118
      %p132 = scmp.eq.s32.totalorder %s18, 7
      %p133 = por %p131, %p132
      %p135 = scmp.ne.s32.totalorder %s118, %s134
      %p136 = scmp.eq.s32.totalorder %s18, 0
      %p137 = por %p135, %p136
      %p138 = scmp.le.s32.totalorder 1, %s12
      %p139 = scmp.lt.s32.totalorder %s12, 9
      %p140 = pnand %p138, %p139
      %p141 = pneg %p140
      // Predicated region
      $region9: #{tpu_custom_call.1} parent=5 // pred_check
        _
      $region10: #{tpu_custom_call.1} parent=5 // pred_check_branch
        %143 = sbr.rel (%p140) target = $region12
      $region11: #{tpu_custom_call.1} parent=5 // pred_region
        %s144 = ssub.s32 %s12, 1
      $region12: #{tpu_custom_call.1} parent=5 // pred_fallthru
        _
      %p145 = scmp.lt.s32.totalorder %s12, 8
      // Predicated region
      $region13: #{tpu_custom_call.1} parent=5 // pred_check
        %p146 = pneg %p145
      $region14: #{tpu_custom_call.1} parent=5 // pred_check_branch
        %148 = sbr.rel (%p146) target = $region16
      $region15: #{tpu_custom_call.1} parent=5 // pred_region
        // Predicated region
        $region17: #{tpu_custom_call.1} parent=15 // pred_check
          %p149 = pneg %p44
        $region18: #{tpu_custom_call.1} parent=15 // pred_check_branch
          %151 = sbr.rel (%p149) target = $region20
        $region19: #{tpu_custom_call.1} parent=15 // pred_region
          %s152 = smul.u32 2, %s19
          %p153 = scmp.lt.s32.totalorder %s152, 7
          %s154 = scalar_select %p153, %s152, 7
          %s155 = smul.addr %s154, 8
          %s156 = scalar_lea.vmem %s0, %s155
          %s157 = smul.u32 2, %s19
        $region20: #{tpu_custom_call.1} parent=15 // pred_fallthru
          _
        // Predicated region
        $region21: #{tpu_custom_call.1} parent=15 // pred_check
          %p158 = pneg %p70
        $region22: #{tpu_custom_call.1} parent=15 // pred_check_branch
          %160 = sbr.rel (%p158) target = $region24
        $region23: #{tpu_custom_call.1} parent=15 // pred_region
          %p161 = scmp.lt.s32.totalorder %s20, 1
          %s162 = scalar_select %p161, %s20, 1
          %s163 = smul.addr %s162, 8
          %s164 = scalar_lea.vmem %s1, %s163
        $region24: #{tpu_custom_call.1} parent=15 // pred_fallthru
          _
        // Predicated region
        $region25: #{tpu_custom_call.1} parent=15 // pred_check
          %p165 = pneg %p98
        $region26: #{tpu_custom_call.1} parent=15 // pred_check_branch
          %167 = sbr.rel (%p165) target = $region28
        $region27: #{tpu_custom_call.1} parent=15 // pred_region
          %s168 = sand.u32 %s88, 1
          %s169 = scalar_lea.sflag [#allocation5], %s168
          %s170 = sand.u32 %s88, 1
          %s171 = smul.addr %s170, 128
          %s172 = scalar_lea.vmem [#allocation4], %s171
          %s173 = smul.u32 16, %s19
          %s175 = ssub.s32 2048, 2048
          %176 = vsyncadd %s169, %s175
          %s177 = smul.addr %s173, 2
          %s178 = sadd.s32 %s20, %s177
          %s179 = smul.addr %s178, 128
          %s180 = scalar_lea.hbm %s2, %s179
          %s181 = sshll.u32 %s172, 4
          %s182 = int_to_ptr.vmem [resolvable:$true] %s181
          %187 = dma.hbm_to_vmem [thread:$0]  %s180, 2048, %s182, %s169, 256, 128, 8
        $region28: #{tpu_custom_call.1} parent=15 // pred_fallthru
          _
      $region16: #{tpu_custom_call.1} parent=5 // pred_fallthru
        _
      %p188 = scmp.le.s32.totalorder 1, %s12
      %p189 = scmp.lt.s32.totalorder %s12, 9
      %p190 = pnand %p188, %p189
      %p191 = pneg %p190
      // Predicated region
      $region29: #{tpu_custom_call.1} parent=5 // pred_check
        _
      $region30: #{tpu_custom_call.1} parent=5 // pred_check_branch
        %193 = sbr.rel (%p190) target = $region32
      $region31: #{tpu_custom_call.1} parent=5 // pred_region
        %s194 = ssub.s32 %s12, 1
        %s195 = sand.u32 %s91, 1
        %s196 = scalar_lea.sflag [#allocation5], %s195
        %s197 = sand.u32 %s91, 1
        %s198 = smul.addr %s197, 128
        %s199 = scalar_lea.vmem [#allocation4], %s198
        // Predicated region
        $region33: #{tpu_custom_call.1} parent=31 // pred_check
          %p200 = pneg %p104
        $region34: #{tpu_custom_call.1} parent=31 // pred_check_branch
          %202 = sbr.rel (%p200) target = $region36
        $region35: #{tpu_custom_call.1} parent=31 // pred_region
          %203 = dma.done %s196, 2048
        $region36: #{tpu_custom_call.1} parent=31 // pred_fallthru
          _
        %s204 = smul.u32 2, %s21
        %p205 = scmp.lt.s32.totalorder %s204, 7
        %s206 = scalar_select %p205, %s204, 7
        %s207 = smul.addr %s206, 8
        %s208 = scalar_lea.vmem %s0, %s207
        %p209 = pneg %p50
        %p210 = pneg %p47
        %p211 = scmp.lt.s32.totalorder %s22, 1
        %s212 = scalar_select %p211, %s22, 1
        %s213 = smul.addr %s212, 8
        %s214 = scalar_lea.vmem %s1, %s213
        %p215 = pneg %p76
        %p216 = pneg %p73
        %s217 = sand.u32 %s91, 1
        %s218 = scalar_lea.sflag [#allocation5], %s217
        %s219 = sand.u32 %s91, 1
        %s220 = smul.addr %s219, 128
        %s221 = scalar_lea.vmem [#allocation4], %s220
        %p222 = pneg %p104
        %p223 = pneg %p101
        %p224 = pneg %p130
        %p225 = pneg %p127
        %s226 = smul.u32 2, %s21
        %p227 = scmp.lt.s32.totalorder %s226, 7
        %s228 = scalar_select %p227, %s226, 7
        %s229 = smul.addr %s228, 8
        %s230 = scalar_lea.vmem %s3, %s229
        %s231 = smul.u32 2, %s21
        %p232 = scmp.lt.s32.totalorder %s231, 7
        %s233 = scalar_select %p232, %s231, 7
        %s234 = smul.addr %s233, 8
        %s235 = scalar_lea.vmem %s0, %s234
        %s236 = smul.u32 2, %s21
        %p237 = scmp.lt.s32.totalorder %s22, 1
        %s238 = scalar_select %p237, %s22, 1
        %s239 = smul.addr %s238, 8
        %s240 = scalar_lea.vmem %s1, %s239
        %s241 = smul.u32 16, %s21
        %s242 = smul.u32 2, %s21
        %p243 = scmp.lt.s32.totalorder %s242, 7
        %s244 = scalar_select %p243, %s242, 7
        %s245 = smul.addr %s244, 8
        %s246 = scalar_lea.vmem %s3, %s245
        %s247 = smul.u32 2, %s21
        %p248 = scmp.eq.s32.totalorder %s22, 0
        // Predicated region
        $region37: #{tpu_custom_call.1} parent=31 // pred_check
          %p249 = pneg %p248
        $region38: #{tpu_custom_call.1} parent=31 // pred_check_branch
          %251 = sbr.rel (%p249) target = $region40
        $region39: #{tpu_custom_call.1} parent=31 // pred_region
          %252 = vst [vmem:[#allocation2] sm:$0xff] 0.0
          %253 = vst [vmem:[#allocation2 + $0x8] sm:$0xff] 0.0
          %254 = vst [vmem:[#allocation3] sm:$0xff] 0.0
          %255 = vst [vmem:[#allocation3 + $0x8] sm:$0xff] 0.0
        $region40: #{tpu_custom_call.1} parent=31 // pred_fallthru
          _
        %v256 = vld [vmem:[%s240] sm:$0xff]
        %s257 = smul.u32 0, 8
        %s258 = scalar_lea.vmem %s199, %s257 [#allocation4]
        %v259 = vld [vmem:[%s258] sm:$0xff]
        %v260 = vld [vmem:[%s258 + $0x8] sm:$0xff]
        %v261 = vld [vmem:[%s258 + $0x10] sm:$0xff]
        %v262 = vld [vmem:[%s258 + $0x18] sm:$0xff]
        %v263 = vld [vmem:[%s258 + $0x20] sm:$0xff]
        %v264 = vld [vmem:[%s258 + $0x28] sm:$0xff]
        %v265 = vld [vmem:[%s258 + $0x30] sm:$0xff]
        %v266 = vld [vmem:[%s258 + $0x38] sm:$0xff]
        %v267 = vld [vmem:[#allocation2] sm:$0xff]
        %v268 = vmul.f32 %v259, %v256
        %v269 = vmul.f32 %v260, %v256
        %v270 = vmul.f32 %v261, %v256
        %v271 = vmul.f32 %v262, %v256
        %v272 = vmul.f32 %v263, %v256
        %v273 = vmul.f32 %v264, %v256
        %v274 = vmul.f32 %v265, %v256
        %v275 = vmul.f32 %v266, %v256
        %v276 = vrot.slane %v268, 4
        %v277 = vadd.f32 %v268, %v276
        %v278 = vrot.slane %v277, 2
        %v279 = vadd.f32 %v277, %v278
        %v280 = vrot.slane %v279, 1
        %v281 = vadd.f32 %v279, %v280
        %v282 = vrot.slane %v269, 4
        %v283 = vadd.f32 %v269, %v282
        %v284 = vrot.slane %v283, 2
        %v285 = vadd.f32 %v283, %v284
        %v286 = vrot.slane %v285, 1
        %v287 = vadd.f32 %v285, %v286
        %v288 = vrot.slane %v270, 4
        %v289 = vadd.f32 %v270, %v288
        %v290 = vrot.slane %v289, 2
        %v291 = vadd.f32 %v289, %v290
        %v292 = vrot.slane %v291, 1
        %v293 = vadd.f32 %v291, %v292
        %v294 = vrot.slane %v271, 4
        %v295 = vadd.f32 %v271, %v294
        %v296 = vrot.slane %v295, 2
        %v297 = vadd.f32 %v295, %v296
        %v298 = vrot.slane %v297, 1
        %v299 = vadd.f32 %v297, %v298
        %v300 = vrot.slane %v272, 4
        %v301 = vadd.f32 %v272, %v300
        %v302 = vrot.slane %v301, 2
        %v303 = vadd.f32 %v301, %v302
        %v304 = vrot.slane %v303, 1
        %v305 = vadd.f32 %v303, %v304
        %v306 = vrot.slane %v273, 4
        %v307 = vadd.f32 %v273, %v306
        %v308 = vrot.slane %v307, 2
        %v309 = vadd.f32 %v307, %v308
        %v310 = vrot.slane %v309, 1
        %v311 = vadd.f32 %v309, %v310
        %v312 = vrot.slane %v274, 4
        %v313 = vadd.f32 %v274, %v312
        %v314 = vrot.slane %v313, 2
        %v315 = vadd.f32 %v313, %v314
        %v316 = vrot.slane %v315, 1
        %v317 = vadd.f32 %v315, %v316
        %v318 = vrot.slane %v275, 4
        %v319 = vadd.f32 %v275, %v318
        %v320 = vrot.slane %v319, 2
        %v321 = vadd.f32 %v319, %v320
        %v322 = vrot.slane %v321, 1
        %v323 = vadd.f32 %v321, %v322
        %vm332 = vcmask 1041409
        %v333 = vsel %vm332, %v287, %v281
        %vm334 = vcmask 1042434
        %v335 = vsel %vm334, %v293, %v333
        %vm336 = vcmask 1043459
        %v337 = vsel %vm336, %v299, %v335
        %vm338 = vcmask 1044484
        %v339 = vsel %vm338, %v305, %v337
        %vm340 = vcmask 1045509
        %v341 = vsel %vm340, %v311, %v339
        %vm342 = vcmask 1046534
        %v343 = vsel %vm342, %v317, %v341
        %vm344 = vcmask 1047559
        %v345 = vsel %vm344, %v323, %v343
        %v347 = vadd.f32 %v267, %v345
        %348 = vst [vmem:[#allocation2] sm:$0xff] %v347
        %v349 = vld [vmem:[#allocation3] sm:$0xff]
        %v350 = vrot.slane %v259, 4
        %v351 = vadd.f32 %v259, %v350
        %v352 = vrot.slane %v351, 2
        %v353 = vadd.f32 %v351, %v352
        %v354 = vrot.slane %v353, 1
        %v355 = vadd.f32 %v353, %v354
        %v356 = vrot.slane %v260, 4
        %v357 = vadd.f32 %v260, %v356
        %v358 = vrot.slane %v357, 2
        %v359 = vadd.f32 %v357, %v358
        %v360 = vrot.slane %v359, 1
        %v361 = vadd.f32 %v359, %v360
        %v362 = vrot.slane %v261, 4
        %v363 = vadd.f32 %v261, %v362
        %v364 = vrot.slane %v363, 2
        %v365 = vadd.f32 %v363, %v364
        %v366 = vrot.slane %v365, 1
        %v367 = vadd.f32 %v365, %v366
        %v368 = vrot.slane %v262, 4
        %v369 = vadd.f32 %v262, %v368
        %v370 = vrot.slane %v369, 2
        %v371 = vadd.f32 %v369, %v370
        %v372 = vrot.slane %v371, 1
        %v373 = vadd.f32 %v371, %v372
        %v374 = vrot.slane %v263, 4
        %v375 = vadd.f32 %v263, %v374
        %v376 = vrot.slane %v375, 2
        %v377 = vadd.f32 %v375, %v376
        %v378 = vrot.slane %v377, 1
        %v379 = vadd.f32 %v377, %v378
        %v380 = vrot.slane %v264, 4
        %v381 = vadd.f32 %v264, %v380
        %v382 = vrot.slane %v381, 2
        %v383 = vadd.f32 %v381, %v382
        %v384 = vrot.slane %v383, 1
        %v385 = vadd.f32 %v383, %v384
        %v386 = vrot.slane %v265, 4
        %v387 = vadd.f32 %v265, %v386
        %v388 = vrot.slane %v387, 2
        %v389 = vadd.f32 %v387, %v388
        %v390 = vrot.slane %v389, 1
        %v391 = vadd.f32 %v389, %v390
        %v392 = vrot.slane %v266, 4
        %v393 = vadd.f32 %v266, %v392
        %v394 = vrot.slane %v393, 2
        %v395 = vadd.f32 %v393, %v394
        %v396 = vrot.slane %v395, 1
        %v397 = vadd.f32 %v395, %v396
        %v406 = vsel %vm332, %v361, %v355
        %v407 = vsel %vm334, %v367, %v406
        %v408 = vsel %vm336, %v373, %v407
        %v409 = vsel %vm338, %v379, %v408
        %v410 = vsel %vm340, %v385, %v409
        %v411 = vsel %vm342, %v391, %v410
        %v412 = vsel %vm344, %v397, %v411
        %v414 = vadd.f32 %v349, %v412
        %415 = vst [vmem:[#allocation3] sm:$0xff] %v414
        %s416 = smul.u32 8, 8
        %s417 = scalar_lea.vmem %s199, %s416 [#allocation4]
        %v418 = vld [vmem:[%s417] sm:$0xff]
        %v419 = vld [vmem:[%s417 + $0x8] sm:$0xff]
        %v420 = vld [vmem:[%s417 + $0x10] sm:$0xff]
        %v421 = vld [vmem:[%s417 + $0x18] sm:$0xff]
        %v422 = vld [vmem:[%s417 + $0x20] sm:$0xff]
        %v423 = vld [vmem:[%s417 + $0x28] sm:$0xff]
        %v424 = vld [vmem:[%s417 + $0x30] sm:$0xff]
        %v425 = vld [vmem:[%s417 + $0x38] sm:$0xff]
        %s426 = scalar_lea.vmem [#allocation2], 8
        %v427 = vld [vmem:[%s426] sm:$0xff]
        %v428 = vmul.f32 %v418, %v256
        %v429 = vmul.f32 %v419, %v256
        %v430 = vmul.f32 %v420, %v256
        %v431 = vmul.f32 %v421, %v256
        %v432 = vmul.f32 %v422, %v256
        %v433 = vmul.f32 %v423, %v256
        %v434 = vmul.f32 %v424, %v256
        %v435 = vmul.f32 %v425, %v256
        %v436 = vrot.slane %v428, 4
        %v437 = vadd.f32 %v428, %v436
        %v438 = vrot.slane %v437, 2
        %v439 = vadd.f32 %v437, %v438
        %v440 = vrot.slane %v439, 1
        %v441 = vadd.f32 %v439, %v440
        %v442 = vrot.slane %v429, 4
        %v443 = vadd.f32 %v429, %v442
        %v444 = vrot.slane %v443, 2
        %v445 = vadd.f32 %v443, %v444
        %v446 = vrot.slane %v445, 1
        %v447 = vadd.f32 %v445, %v446
        %v448 = vrot.slane %v430, 4
        %v449 = vadd.f32 %v430, %v448
        %v450 = vrot.slane %v449, 2
        %v451 = vadd.f32 %v449, %v450
        %v452 = vrot.slane %v451, 1
        %v453 = vadd.f32 %v451, %v452
        %v454 = vrot.slane %v431, 4
        %v455 = vadd.f32 %v431, %v454
        %v456 = vrot.slane %v455, 2
        %v457 = vadd.f32 %v455, %v456
        %v458 = vrot.slane %v457, 1
        %v459 = vadd.f32 %v457, %v458
        %v460 = vrot.slane %v432, 4
        %v461 = vadd.f32 %v432, %v460
        %v462 = vrot.slane %v461, 2
        %v463 = vadd.f32 %v461, %v462
        %v464 = vrot.slane %v463, 1
        %v465 = vadd.f32 %v463, %v464
        %v466 = vrot.slane %v433, 4
        %v467 = vadd.f32 %v433, %v466
        %v468 = vrot.slane %v467, 2
        %v469 = vadd.f32 %v467, %v468
        %v470 = vrot.slane %v469, 1
        %v471 = vadd.f32 %v469, %v470
        %v472 = vrot.slane %v434, 4
        %v473 = vadd.f32 %v434, %v472
        %v474 = vrot.slane %v473, 2
        %v475 = vadd.f32 %v473, %v474
        %v476 = vrot.slane %v475, 1
        %v477 = vadd.f32 %v475, %v476
        %v478 = vrot.slane %v435, 4
        %v479 = vadd.f32 %v435, %v478
        %v480 = vrot.slane %v479, 2
        %v481 = vadd.f32 %v479, %v480
        %v482 = vrot.slane %v481, 1
        %v483 = vadd.f32 %v481, %v482
        %v492 = vsel %vm332, %v447, %v441
        %v493 = vsel %vm334, %v453, %v492
        %v494 = vsel %vm336, %v459, %v493
        %v495 = vsel %vm338, %v465, %v494
        %v496 = vsel %vm340, %v471, %v495
        %v497 = vsel %vm342, %v477, %v496
        %v498 = vsel %vm344, %v483, %v497
        %v500 = vadd.f32 %v427, %v498
        %501 = vst [vmem:[%s426] sm:$0xff] %v500
        %s502 = scalar_lea.vmem [#allocation3], 8
        %v503 = vld [vmem:[%s502] sm:$0xff]
        %v504 = vrot.slane %v418, 4
        %v505 = vadd.f32 %v418, %v504
        %v506 = vrot.slane %v505, 2
        %v507 = vadd.f32 %v505, %v506
        %v508 = vrot.slane %v507, 1
        %v509 = vadd.f32 %v507, %v508
        %v510 = vrot.slane %v419, 4
        %v511 = vadd.f32 %v419, %v510
        %v512 = vrot.slane %v511, 2
        %v513 = vadd.f32 %v511, %v512
        %v514 = vrot.slane %v513, 1
        %v515 = vadd.f32 %v513, %v514
        %v516 = vrot.slane %v420, 4
        %v517 = vadd.f32 %v420, %v516
        %v518 = vrot.slane %v517, 2
        %v519 = vadd.f32 %v517, %v518
        %v520 = vrot.slane %v519, 1
        %v521 = vadd.f32 %v519, %v520
        %v522 = vrot.slane %v421, 4
        %v523 = vadd.f32 %v421, %v522
        %v524 = vrot.slane %v523, 2
        %v525 = vadd.f32 %v523, %v524
        %v526 = vrot.slane %v525, 1
        %v527 = vadd.f32 %v525, %v526
        %v528 = vrot.slane %v422, 4
        %v529 = vadd.f32 %v422, %v528
        %v530 = vrot.slane %v529, 2
        %v531 = vadd.f32 %v529, %v530
        %v532 = vrot.slane %v531, 1
        %v533 = vadd.f32 %v531, %v532
        %v534 = vrot.slane %v423, 4
        %v535 = vadd.f32 %v423, %v534
        %v536 = vrot.slane %v535, 2
        %v537 = vadd.f32 %v535, %v536
        %v538 = vrot.slane %v537, 1
        %v539 = vadd.f32 %v537, %v538
        %v540 = vrot.slane %v424, 4
        %v541 = vadd.f32 %v424, %v540
        %v542 = vrot.slane %v541, 2
        %v543 = vadd.f32 %v541, %v542
        %v544 = vrot.slane %v543, 1
        %v545 = vadd.f32 %v543, %v544
        %v546 = vrot.slane %v425, 4
        %v547 = vadd.f32 %v425, %v546
        %v548 = vrot.slane %v547, 2
        %v549 = vadd.f32 %v547, %v548
        %v550 = vrot.slane %v549, 1
        %v551 = vadd.f32 %v549, %v550
        %v560 = vsel %vm332, %v515, %v509
        %v561 = vsel %vm334, %v521, %v560
        %v562 = vsel %vm336, %v527, %v561
        %v563 = vsel %vm338, %v533, %v562
        %v564 = vsel %vm340, %v539, %v563
        %v565 = vsel %vm342, %v545, %v564
        %v566 = vsel %vm344, %v551, %v565
        %v568 = vadd.f32 %v503, %v566
        %569 = vst [vmem:[%s502] sm:$0xff] %v568
        %p570 = scmp.eq.s32.totalorder %s22, 1
        // Predicated region
        $region41: #{tpu_custom_call.1} parent=31 // pred_check
          %p571 = pneg %p570
        $region42: #{tpu_custom_call.1} parent=31 // pred_check_branch
          %573 = sbr.rel (%p571) target = $region44
        $region43: #{tpu_custom_call.1} parent=31 // pred_region
          %v574 = vld [vmem:[#allocation2] sm:$0xff]
          %v575 = vld [vmem:[#allocation2 + $0x8] sm:$0xff]
          %v576 = vld [vmem:[#allocation3] sm:$0xff]
          %v577 = vld [vmem:[#allocation3 + $0x8] sm:$0xff]
          %578 = vrot.lane.b32.xlu0 %v574, 96
          %v579 = vpop.permute.xlu0 %578
          %580 = vrot.lane.b32.xlu0 %v575, 96
          %v581 = vpop.permute.xlu0 %580
          %v582 = vadd.f32 %v574, %v579
          %v583 = vadd.f32 %v575, %v581
          %584 = vrot.lane.b32.xlu0 %v576, 96
          %v585 = vpop.permute.xlu0 %584
          %586 = vrot.lane.b32.xlu0 %v577, 96
          %v587 = vpop.permute.xlu0 %586
          %v588 = vadd.f32 %v576, %v585
          %v589 = vadd.f32 %v577, %v587
          %590 = vrot.lane.b32.xlu0 %v574, 64
          %v591 = vpop.permute.xlu0 %590
          %592 = vrot.lane.b32.xlu0 %v575, 64
          %v593 = vpop.permute.xlu0 %592
          %v594 = vadd.f32 %v582, %v591
          %v595 = vadd.f32 %v583, %v593
          %596 = vrot.lane.b32.xlu0 %v576, 64
          %v597 = vpop.permute.xlu0 %596
          %598 = vrot.lane.b32.xlu0 %v577, 64
          %v599 = vpop.permute.xlu0 %598
          %v600 = vadd.f32 %v588, %v597
          %v601 = vadd.f32 %v589, %v599
          %602 = vrot.lane.b32.xlu0 %v574, 32
          %v603 = vpop.permute.xlu0 %602
          %604 = vrot.lane.b32.xlu0 %v575, 32
          %v605 = vpop.permute.xlu0 %604
          %v606 = vadd.f32 %v594, %v603
          %v607 = vadd.f32 %v595, %v605
          %608 = vrot.lane.b32.xlu0 %v576, 32
          %v609 = vpop.permute.xlu0 %608
          %610 = vrot.lane.b32.xlu0 %v577, 32
          %v611 = vpop.permute.xlu0 %610
          %v612 = vadd.f32 %v600, %v609
          %v613 = vadd.f32 %v601, %v611
          %v614 = vadd.f32 %v612, 1e-20
          %v615 = vadd.f32 %v613, 1e-20
          %v616 = vrcp.pop %v614
          %v617 = vrcp.pop %v615
          %v618 = vld [vmem:[%s235] sm:$0xff]
          %v619 = vld [vmem:[%s235 + $0x8] sm:$0xff]
          %v620 = vmul.f32 %v606, %v616
          %v621 = vmul.f32 %v607, %v617
          %v622 = vadd.f32 %v618, %v620
          %v623 = vadd.f32 %v619, %v621
          %vm624 = vcmask 261120
          %625 = vst.msk [vmem:[%s246] sm:$0xff] %vm624, %v622
          %626 = vst.msk [vmem:[%s246 + $0x8] sm:$0xff] %vm624, %v623
        $region44: #{tpu_custom_call.1} parent=31 // pred_fallthru
          _
        %s627 = smul.u32 2, %s21
        %p628 = scmp.lt.s32.totalorder %s627, 7
        %s629 = scalar_select %p628, %s627, 7
        %s630 = smul.addr %s629, 8
        %s631 = scalar_lea.vmem %s3, %s630
        // Predicated region
        $region45: #{tpu_custom_call.1} parent=31 // pred_check
          %p632 = pneg %p127
        $region46: #{tpu_custom_call.1} parent=31 // pred_check_branch
          %634 = sbr.rel (%p632) target = $region48
        $region47: #{tpu_custom_call.1} parent=31 // pred_region
          %s635 = smul.u32 2, %s21
        $region48: #{tpu_custom_call.1} parent=31 // pred_fallthru
          _
      $region32: #{tpu_custom_call.1} parent=5 // pred_fallthru
        _
      %p636 = scmp.le.s32.totalorder 2, %s12
      // Predicated region
      $region49: #{tpu_custom_call.1} parent=5 // pred_check
        %p637 = pneg %p636
      $region50: #{tpu_custom_call.1} parent=5 // pred_check_branch
        %639 = sbr.rel (%p637) target = $region52
      $region51: #{tpu_custom_call.1} parent=5 // pred_region
        %s640 = ssub.s32 %s12, 2
        // Predicated region
        $region53: #{tpu_custom_call.1} parent=51 // pred_check
          %p641 = pneg %p133
        $region54: #{tpu_custom_call.1} parent=51 // pred_check_branch
          %643 = sbr.rel (%p641) target = $region56
        $region55: #{tpu_custom_call.1} parent=51 // pred_region
          %s644 = smul.u32 2, %s23
          %p645 = scmp.lt.s32.totalorder %s644, 7
          %s646 = scalar_select %p645, %s644, 7
          %s647 = smul.addr %s646, 8
          %s648 = scalar_lea.vmem %s3, %s647
        $region56: #{tpu_custom_call.1} parent=51 // pred_fallthru
          _
      $region52: #{tpu_custom_call.1} parent=5 // pred_fallthru
        _
    $region6: #{tpu_custom_call.1} parent=1 // loop_footer
      %s16 = sadd.s32 1, %s12
    $region7: #{tpu_custom_call.1} parent=1 // loop_footer_branch
      %11 = sbr.rel target = $region3
    $region8: #{tpu_custom_call.1} parent=1 // loop_exit
      _
    %649 = vsyncpa [#allocation5], 1
    %s650 = scalar_lea.sflag [#allocation5], 1
    %651 = vsyncpa %s650, 1

</llo_original>
